<compile_context>
chip_gen: v7x
topology: tpu7x:2x2x1
jax: 0.10.0
libtpu: 0.0.40
codegen_flags: <defaults>
</compile_context>

<pallas_src>
import functools

import jax
import jax.numpy as jnp
from jax.experimental import pallas as pl
from jax.experimental.pallas import tpu as pltpu

SMOOTH = 1e-6
_LANES = 128
_TARGET_BLOCK_BYTES = 2 * 1024 * 1024   # preds HBM bytes per grid step (~roofline sweet spot)
_VMEM_BUDGET_BYTES = 20 * 1024 * 1024   # self-imposed footprint cap (headroom under the limit)
_VMEM_LIMIT_BYTES = 32 * 1024 * 1024    # explicit scoped-VMEM limit (safe on v5e/v6e/v7x)
_TEMP_SLABS = 6                         # estimate of live f32 temporaries per spatial element


def _round_up(x, m):
    return ((x + m - 1) // m) * m


def _round_down(x, m):
    return (x // m) * m


def _batch_block(n, per_sample_bytes, target_bytes):
    """Largest divisor nb of n with nb*per_sample_bytes <= target while keeping
    >= 2 batch grid steps (dual-TensorCore sharding on v7x)."""
    nb = 1
    for d in range(1, n + 1):
        if d * per_sample_bytes > target_bytes:
            break
        if n % d == 0 and n // d >= 2:
            nb = d
    return nb


def _dice_partial_kernel(preds_ref, targets_ref, out_ref, *,
                         axis1_block, axis1_limit, mask_tail):
    """One grid step: class-1 softmax prob + partial dice sums.

    preds_ref:   (nb, C, tile_r, 128)  or  (nb, C, TS)   -- logits
    targets_ref: (nb, 1, tile_r, 128)  or  (nb, 1, TS)   -- labels (any dtype)
    out_ref:     (1, 1, 2, 128)  row 0 = sum(p1*t), row 1 = sum(p1) + sum(t)
    """
    C = preds_ref.shape[1]

    # Numerically-stable softmax over channels, one channel slab live at a time.
    m = preds_ref[:, 0].astype(jnp.float32)
    for c in range(1, C):
        m = jnp.maximum(m, preds_ref[:, c].astype(jnp.float32))

    denom = None
    e1 = None
    for c in range(C):
        e = jnp.exp(preds_ref[:, c].astype(jnp.float32) - m)
        denom = e if denom is None else denom + e
        if c == 1:
            e1 = e
    p1 = e1 / denom                                   # P(class 1)

    t = targets_ref[:, 0].astype(jnp.float32)

    if mask_tail:
        # Last spatial tile may extend past the real extent (ragged tile read
        # garbage from OOB): zero invalid rows/lanes before reducing.
        pos = (pl.program_id(1) * axis1_block
               + jax.lax.broadcasted_iota(jnp.int32, p1.shape, 1))
        valid = pos < axis1_limit
        p1 = jnp.where(valid, p1, 0.0)
        t = jnp.where(valid, t, 0.0)

    inter = jnp.sum(p1 * t)
    union = jnp.sum(p1 + t)                           # == sum(p1) + sum(t)

    # Single store of the whole (1,1,2,128) block: row 0 <- inter, row 1 <- union.
    row = jax.lax.broadcasted_iota(jnp.int32, (1, 1, 2, _LANES), 2)
    out_ref[...] = jnp.where(row == 0, inter, union)


def dice_loss(preds, targets, *, smooth=SMOOTH,
              target_block_bytes=_TARGET_BLOCK_BYTES,
              vmem_budget_bytes=_VMEM_BUDGET_BYTES):
    """Forward pass of DiceLoss.

    preds:   (N, C, H, W) logits (f32 or bf16), C >= 2; softmax channel 1 used.
    targets: (N, H, W) labels; int / bool / float, cast to f32 in-kernel.
    """
    N, C, H, W = preds.shape
    assert C >= 2, "DiceLoss takes softmax channel 1; requires C >= 2"
    assert targets.shape == (N, H, W)
    S = H * W

    # No standalone dtype-conversion pass for int/float targets (cast in-kernel).
    # bool is converted to int8 (1 byte/elem) for a clean Mosaic load.
    if targets.dtype == jnp.bool_:
        targets = targets.astype(jnp.int8)

    ip = preds.dtype.itemsize
    it = targets.dtype.itemsize
    per_sample_bytes = C * S * ip
    nb = _batch_block(N, per_sample_bytes, target_block_bytes)
    gb = N // nb

    if S % _LANES == 0:
        # ---- lane-dense path: free reshape to (N, C, R, 128) ------------------
        R = S // _LANES
        row_align = 8 if ip >= 4 else (16 if ip == 2 else 32)
        hbm_per_row = nb * C * _LANES * ip
        vmem_per_row = nb * _LANES * (2 * C * ip + 2 * it + 4 * _TEMP_SLABS)
        rows = min(
            max(row_align, _round_down(target_block_bytes // hbm_per_row, row_align)),
            max(row_align, _round_down(vmem_budget_bytes // vmem_per_row, row_align)))
        if R <= rows:
            tile_r, num_tiles = R, 1
        else:
            tile_r, num_tiles = rows, pl.cdiv(R, rows)
        # Keep >= 2 grid steps when the data allows (v7x dual-TensorCore).
        if gb * num_tiles == 1 and R > row_align:
            tile_r = _round_up(pl.cdiv(R, 2), row_align)
            num_tiles = pl.cdiv(R, tile_r)
        mask_tail = (tile_r * num_tiles) != R
        axis1_block, axis1_limit = tile_r, R

        preds_v = preds.reshape(N, C, R, _LANES)
        targets_v = targets.reshape(N, 1, R, _LANES)
        in_specs = [
            pl.BlockSpec((nb, C, tile_r, _LANES), lambda b, s: (b, 0, s, 0)),
            pl.BlockSpec((nb, 1, tile_r, _LANES), lambda b, s: (b, 0, s, 0)),
        ]
    else:
        # ---- flat fallback: tile the un-reshaped (N, C, S) array --------------
        # Rare (non-128-aligned spatial size); layout is less VMEM-dense but the
        # HBM traffic is still a single pass with no padded copy.
        G = pl.cdiv(S, _LANES)                        # 128-lane groups (last ragged)
        c_pad = _round_up(C, 8)
        hbm_per_group = nb * C * _LANES * ip
        vmem_per_group = _LANES * (2 * nb * c_pad * ip + 2 * nb * 8 * it
                                   + 4 * _TEMP_SLABS * _round_up(nb, 8))
        groups = min(max(1, target_block_bytes // hbm_per_group),
                     max(1, vmem_budget_bytes // vmem_per_group))
        if G <= groups:
            ts, num_tiles = S, 1                      # full extent, no masking
        else:
            ts = groups * _LANES
            num_tiles = pl.cdiv(S, ts)
        if gb * num_tiles == 1 and G >= 2:
            ts = pl.cdiv(G, 2) * _LANES
            num_tiles = pl.cdiv(S, ts)
        mask_tail = (ts * num_tiles) != S
        axis1_block, axis1_limit = ts, S

        preds_v = preds.reshape(N, C, S)
        targets_v = targets.reshape(N, 1, S)
        in_specs = [
            pl.BlockSpec((nb, C, ts), lambda b, s: (b, 0, s)),
            pl.BlockSpec((nb, 1, ts), lambda b, s: (b, 0, s)),
        ]

    kernel = functools.partial(_dice_partial_kernel,
                               axis1_block=axis1_block,
                               axis1_limit=axis1_limit,
                               mask_tail=mask_tail)

    partials = pl.pallas_call(
        kernel,
        out_shape=jax.ShapeDtypeStruct((gb, num_tiles, 2, _LANES), jnp.float32),
        grid_spec=pltpu.PrefetchScalarGridSpec(
            num_scalar_prefetch=0,
            grid=(gb, num_tiles),
            in_specs=in_specs,
            out_specs=pl.BlockSpec((1, 1, 2, _LANES), lambda b, s: (b, s, 0, 0)),
        ),
        compiler_params=pltpu.CompilerParams(
            # Every grid step owns its own output block (no carried state), so
            # both axes shard freely across TensorCores.
            dimension_semantics=("parallel", "parallel"),
            vmem_limit_bytes=_VMEM_LIMIT_BYTES),
    )(preds_v, targets_v)

    # All 128 lanes of each partial row hold the same scalar; take lane 0.
    inter = jnp.sum(partials[:, :, 0, 0])
    union = jnp.sum(partials[:, :, 1, 0])
    dice = (2.0 * inter + smooth) / (union + smooth)
    return 1.0 - dice


def dice_loss_ref(preds, targets, smooth=SMOOTH):
    p = jax.nn.softmax(preds.astype(jnp.float32), axis=1)[:, 1, :, :]
    t = targets.astype(jnp.float32)
    inter = jnp.sum(p * t)
    union = jnp.sum(p) + jnp.sum(t)
    return 1.0 - (2.0 * inter + smooth) / (union + smooth)


if __name__ == "__main__":
    key = jax.random.PRNGKey(0)
    k1, k2, k3, k4, k5, k6 = jax.random.split(key, 6)

    # 1) Canonical small shape (lane-aligned path), int targets, grid (2, 1).
    preds = jax.random.normal(k1, (2, 4, 16, 16), dtype=jnp.float32)
    targets = jax.random.bernoulli(k2, 0.3, (2, 16, 16)).astype(jnp.int32)
    loss = dice_loss(preds, targets)
    jax.block_until_ready(loss)
    ref = dice_loss_ref(preds, targets)
    assert jnp.allclose(loss, ref, atol=1e-4, rtol=1e-4), (loss, ref)

    # 2) Forced-tiny tiles: exercises the ragged-last-tile row mask, float targets.
    preds2 = jax.random.normal(k3, (2, 3, 48, 48), dtype=jnp.float32)
    targets2 = jax.random.bernoulli(k4, 0.4, (2, 48, 48)).astype(jnp.float32)
    loss2 = dice_loss(preds2, targets2, target_block_bytes=12 * 1024)
    jax.block_until_ready(loss2)
    ref2 = dice_loss_ref(preds2, targets2)
    assert jnp.allclose(loss2, ref2, atol=1e-4, rtol=1e-4), (loss2, ref2)

    # 3) Non-lane-aligned spatial size (flat fallback path with masked tail).
    preds3 = jax.random.normal(k5, (2, 4, 15, 15), dtype=jnp.float32)
    targets3 = jax.random.bernoulli(k6, 0.3, (2, 15, 15)).astype(jnp.int32)
    loss3 = dice_loss(preds3, targets3, target_block_bytes=2 * 1024)
    jax.block_until_ready(loss3)
    ref3 = dice_loss_ref(preds3, targets3)
    assert jnp.allclose(loss3, ref3, atol=1e-4, rtol=1e-4), (loss3, ref3)

    print("KERNEL_OK")
</pallas_src>

<mosaic_0001>
module attributes {stable_mosaic.version = 11 : i64} {
  func.func @_dice_partial_kernel(%arg0: i32, %arg1: i32, %arg2: memref<1x4x2x128xf32, #tpu.memory_space<vmem>>, %arg3: memref<1x1x2x128xi32, #tpu.memory_space<vmem>>, %arg4: memref<1x1x2x128xf32, #tpu.memory_space<vmem>>) attributes {dimension_semantics = [#tpu.dimension_semantics<parallel>, #tpu.dimension_semantics<parallel>], iteration_bounds = array<i64: 2, 1>, scalar_prefetch = 0 : i64, scratch_operands = 0 : i64, tpu.core_type = #tpu.core_type<tc>, window_params = [{transform_indices = @transform_0, window_bounds = array<i64: 1, 4, 2, 128>}, {transform_indices = @transform_1, window_bounds = array<i64: 1, 1, 2, 128>}, {transform_indices = @transform_2, window_bounds = array<i64: 1, 1, 2, 128>}]} {
    %c0 = arith.constant 0 : index
    %c0_0 = arith.constant 0 : index
    %c0_1 = arith.constant 0 : index
    %c0_2 = arith.constant 0 : index
    %0 = vector.load %arg2[%c0, %c0_0, %c0_1, %c0_2] : memref<1x4x2x128xf32, #tpu.memory_space<vmem>>, vector<1x1x2x128xf32>
    %1 = vector.shape_cast %0 : vector<1x1x2x128xf32> to vector<1x2x128xf32>
    %c0_3 = arith.constant 0 : index
    %c1 = arith.constant 1 : index
    %c0_4 = arith.constant 0 : index
    %c0_5 = arith.constant 0 : index
    %2 = vector.load %arg2[%c0_3, %c1, %c0_4, %c0_5] : memref<1x4x2x128xf32, #tpu.memory_space<vmem>>, vector<1x1x2x128xf32>
    %3 = vector.shape_cast %2 : vector<1x1x2x128xf32> to vector<1x2x128xf32>
    %4 = arith.maximumf %1, %3 : vector<1x2x128xf32>
    %c0_6 = arith.constant 0 : index
    %c2 = arith.constant 2 : index
    %c0_7 = arith.constant 0 : index
    %c0_8 = arith.constant 0 : index
    %5 = vector.load %arg2[%c0_6, %c2, %c0_7, %c0_8] : memref<1x4x2x128xf32, #tpu.memory_space<vmem>>, vector<1x1x2x128xf32>
    %6 = vector.shape_cast %5 : vector<1x1x2x128xf32> to vector<1x2x128xf32>
    %7 = arith.maximumf %4, %6 : vector<1x2x128xf32>
    %c0_9 = arith.constant 0 : index
    %c3 = arith.constant 3 : index
    %c0_10 = arith.constant 0 : index
    %c0_11 = arith.constant 0 : index
    %8 = vector.load %arg2[%c0_9, %c3, %c0_10, %c0_11] : memref<1x4x2x128xf32, #tpu.memory_space<vmem>>, vector<1x1x2x128xf32>
    %9 = vector.shape_cast %8 : vector<1x1x2x128xf32> to vector<1x2x128xf32>
    %10 = arith.maximumf %7, %9 : vector<1x2x128xf32>
    %c0_12 = arith.constant 0 : index
    %c0_13 = arith.constant 0 : index
    %c0_14 = arith.constant 0 : index
    %c0_15 = arith.constant 0 : index
    %11 = vector.load %arg2[%c0_12, %c0_13, %c0_14, %c0_15] : memref<1x4x2x128xf32, #tpu.memory_space<vmem>>, vector<1x1x2x128xf32>
    %12 = vector.shape_cast %11 : vector<1x1x2x128xf32> to vector<1x2x128xf32>
    %13 = arith.subf %12, %10 : vector<1x2x128xf32>
    %14 = math.exp %13 : vector<1x2x128xf32>
    %c0_16 = arith.constant 0 : index
    %c1_17 = arith.constant 1 : index
    %c0_18 = arith.constant 0 : index
    %c0_19 = arith.constant 0 : index
    %15 = vector.load %arg2[%c0_16, %c1_17, %c0_18, %c0_19] : memref<1x4x2x128xf32, #tpu.memory_space<vmem>>, vector<1x1x2x128xf32>
    %16 = vector.shape_cast %15 : vector<1x1x2x128xf32> to vector<1x2x128xf32>
    %17 = arith.subf %16, %10 : vector<1x2x128xf32>
    %18 = math.exp %17 : vector<1x2x128xf32>
    %19 = arith.addf %14, %18 : vector<1x2x128xf32>
    %c0_20 = arith.constant 0 : index
    %c2_21 = arith.constant 2 : index
    %c0_22 = arith.constant 0 : index
    %c0_23 = arith.constant 0 : index
    %20 = vector.load %arg2[%c0_20, %c2_21, %c0_22, %c0_23] : memref<1x4x2x128xf32, #tpu.memory_space<vmem>>, vector<1x1x2x128xf32>
    %21 = vector.shape_cast %20 : vector<1x1x2x128xf32> to vector<1x2x128xf32>
    %22 = arith.subf %21, %10 : vector<1x2x128xf32>
    %23 = math.exp %22 : vector<1x2x128xf32>
    %24 = arith.addf %19, %23 : vector<1x2x128xf32>
    %c0_24 = arith.constant 0 : index
    %c3_25 = arith.constant 3 : index
    %c0_26 = arith.constant 0 : index
    %c0_27 = arith.constant 0 : index
    %25 = vector.load %arg2[%c0_24, %c3_25, %c0_26, %c0_27] : memref<1x4x2x128xf32, #tpu.memory_space<vmem>>, vector<1x1x2x128xf32>
    %26 = vector.shape_cast %25 : vector<1x1x2x128xf32> to vector<1x2x128xf32>
    %27 = arith.subf %26, %10 : vector<1x2x128xf32>
    %28 = math.exp %27 : vector<1x2x128xf32>
    %29 = arith.addf %24, %28 : vector<1x2x128xf32>
    %30 = arith.divf %18, %29 : vector<1x2x128xf32>
    %c0_28 = arith.constant 0 : index
    %c0_29 = arith.constant 0 : index
    %c0_30 = arith.constant 0 : index
    %c0_31 = arith.constant 0 : index
    %31 = vector.load %arg3[%c0_28, %c0_29, %c0_30, %c0_31] : memref<1x1x2x128xi32, #tpu.memory_space<vmem>>, vector<1x1x2x128xi32>
    %32 = vector.shape_cast %31 : vector<1x1x2x128xi32> to vector<1x2x128xi32>
    %33 = arith.sitofp %32 : vector<1x2x128xi32> to vector<1x2x128xf32>
    %34 = arith.mulf %30, %33 : vector<1x2x128xf32>
    %35 = vector.shape_cast %34 : vector<1x2x128xf32> to vector<1x1x2x128xf32>
    %cst = arith.constant dense<0.000000e+00> : vector<1xf32>
    %36 = vector.multi_reduction <add>, %35, %cst [1, 2, 3] : vector<1x1x2x128xf32> to vector<1xf32>
    %37 = vector.shape_cast %36 : vector<1xf32> to vector<1x1x1x1xf32>
    %38 = vector.extract %37[0, 0, 0, 0] : f32 from vector<1x1x1x1xf32>
    %39 = arith.addf %30, %33 : vector<1x2x128xf32>
    %40 = vector.shape_cast %39 : vector<1x2x128xf32> to vector<1x1x2x128xf32>
    %cst_32 = arith.constant dense<0.000000e+00> : vector<1xf32>
    %41 = vector.multi_reduction <add>, %40, %cst_32 [1, 2, 3] : vector<1x1x2x128xf32> to vector<1xf32>
    %42 = vector.shape_cast %41 : vector<1xf32> to vector<1x1x1x1xf32>
    %43 = vector.extract %42[0, 0, 0, 0] : f32 from vector<1x1x1x1xf32>
    %44 = tpu.iota {dimensions = array<i32: 2>} : vector<1x1x2x128xi32>
    %c0_i32 = arith.constant 0 : i32
    %45 = vector.broadcast %c0_i32 : i32 to vector<1x1x2x128xi32>
    %46 = arith.cmpi eq, %44, %45 : vector<1x1x2x128xi32>
    %47 = vector.broadcast %38 : f32 to vector<1x1x2x128xf32>
    %48 = vector.broadcast %43 : f32 to vector<1x1x2x128xf32>
    %49 = arith.select %46, %47, %48 : vector<1x1x2x128xi1>, vector<1x1x2x128xf32>
    %c0_33 = arith.constant 0 : index
    %c0_34 = arith.constant 0 : index
    %c0_35 = arith.constant 0 : index
    %c0_36 = arith.constant 0 : index
    %50 = vector.load %arg4[%c0_33, %c0_34, %c0_35, %c0_36] : memref<1x1x2x128xf32, #tpu.memory_space<vmem>>, vector<1x1x2x128xf32>
    tpu.vector_store %arg4[%c0_33, %c0_34, %c0_35, %c0_36], %49 {strides = array<i32>} : memref<1x1x2x128xf32, #tpu.memory_space<vmem>>, vector<1x1x2x128xf32>,
    return
  }
  func.func @transform_0(%arg0: i32, %arg1: i32) -> (i32, i32, i32, i32) {
    %c0_i32 = arith.constant 0 : i32
    %c0_i32_0 = arith.constant 0 : i32
    %c0_i32_1 = arith.constant 0 : i32
    return %arg0, %c0_i32, %arg1, %c0_i32_0 : i32, i32, i32, i32
  }
  func.func @transform_1(%arg0: i32, %arg1: i32) -> (i32, i32, i32, i32) {
    %c0_i32 = arith.constant 0 : i32
    %c0_i32_0 = arith.constant 0 : i32
    %c0_i32_1 = arith.constant 0 : i32
    return %arg0, %c0_i32, %arg1, %c0_i32_0 : i32, i32, i32, i32
  }
  func.func @transform_2(%arg0: i32, %arg1: i32) -> (i32, i32, i32, i32) {
    %c0_i32 = arith.constant 0 : i32
    %c0_i32_0 = arith.constant 0 : i32
    %c0_i32_1 = arith.constant 0 : i32
    return %arg0, %arg1, %c0_i32, %c0_i32_0 : i32, i32, i32, i32
  }
}

</mosaic_0001>

<llo_original>
// kernel: tpu_custom_call.1
$region0: #{tpu_custom_call.1}
  #allocation0 [shape = 'u32[]', space=smem, size = 0x4, offset = 0x4, fixed_abs, tag = 'smem constant byte address 0x4 - core index']
  #allocation1 [shape = 'u32[144,128]{1,0:T(1,128)}', space=vmem, size = 0x12000, scoped, tag = 'internal scratch']
  %s0 = inlined_call_operand.hbm [shape: f32[2,4,2,128], index: 0, kind: input, shape index: {}]
  %s1 = inlined_call_operand.hbm [shape: s32[2,1,2,128], index: 1, kind: input, shape index: {}]
  %s2 = inlined_call_operand.hbm [shape: f32[2,1,2,128], index: 2, kind: output, shape index: {}]
  %s3 = sld [smem:[#allocation0]]
  $region49: #{tpu_custom_call.1} parent=0
    _
  %s5 = ssub.s32 1, %s3
  %s6 = scalar_select 0, %s5, %s3
  $region1: #{tpu_custom_call.1} parent=0
    #allocation2 [shape = 'u8[8192]{0}', space=vmem, size = 0x2000, scoped, tag = 'input window, operand 0']
    #allocation3 [shape = 's32[2]{0}', space=sflag, size = 0x8, scoped, tag = 'scoped memory for tpu_custom_call.1']
    #allocation4 [shape = 's32[2]{0}', space=sflag, size = 0x8, scoped, tag = 'scoped memory for tpu_custom_call.1']
    #allocation5 [shape = 'u8[2048]{0}', space=vmem, size = 0x800, scoped, tag = 'input window, operand 1']
    #allocation6 [shape = 's32[2]{0}', space=sflag, size = 0x8, scoped, tag = 'scoped memory for tpu_custom_call.1']
    #allocation7 [shape = 'u8[2048]{0}', space=vmem, size = 0x800, scoped, tag = 'output window, operand 0']
    %7 = vsyncpa [#allocation3], 0
    %s8 = scalar_lea.sflag [#allocation3], 1
    %9 = vsyncpa %s8, 0
    %10 = vsyncpa [#allocation6], 0
    %s11 = scalar_lea.sflag [#allocation6], 1
    %12 = vsyncpa %s11, 0
    %13 = vsyncpa [#allocation4], 0
    %s14 = scalar_lea.sflag [#allocation4], 1
    %15 = vsyncpa %s14, 0
    loop: start=0, step=1, limit=4
    $region2: #{tpu_custom_call.1} parent=1 // loop_pre_header
      _
    $region3: #{tpu_custom_call.1} parent=1 // loop_header
      %s17 = sphi 0, %s21
      %p18 = scmp.ge.s32.totalorder %s17, 4
      %s24 = sphi 0, %s36
      %s25 = sphi 0, %s32
      %s26 = sphi 0, %s24
      %s27 = sphi 0, %s25
      %s28 = sphi 0, %s26
      %s29 = sphi 0, %s27
      %s41 = sphi 0, %s43
      %s44 = sphi 0, %s41
      %s45 = sphi 0, %s44
      %s61 = sphi 0, %s45
      %s69 = sphi 0, %s71
      %s72 = sphi 0, %s69
      %s73 = sphi 0, %s72
      %s89 = sphi 0, %s73
      %s97 = sphi 0, %s99
      %s100 = sphi 0, %s97
      %s101 = sphi 0, %s100
      %s117 = sphi 0, %s101
    $region4: #{tpu_custom_call.1} parent=1 // loop_header_branch
      %20 = sbr.rel (%p18) target = $region8
    $region5: #{tpu_custom_call.1} parent=1 // loop_body
      %s22 = ssub.s32 %s17, 1
      %s23 = ssub.s32 %s17, 2
      %s30 = sadd.s32 1, %s25
      %p31 = scmp.ge.s32.totalorder %s30, 1
      %s32 = scalar_select %p31, 0, %s30
      %s33 = sadd.s32 1, %s24
      %s34 = scalar_select %p31, %s33, %s24
      %p35 = scmp.ge.s32.totalorder %s34, 2
      %s36 = scalar_select %p35, 0, %s34
      %s37 = ssub.s32 %s24, %s36
      %s38 = ssub.s32 %s25, %s32
      %s39 = sor.u32 %s37, %s38
      %p40 = scmp.eq.s32.totalorder %s39, 0
      %s42 = sadd.s32 %s41, 1
      %s43 = scalar_select %p40, %s41, %s42
      %p46 = pneg %p40
      %p47 = scmp.eq.s32.totalorder %s17, 1
      %p48 = por %p46, %p47
      %p49 = scmp.ne.s32.totalorder %s41, %s44
      %p50 = scmp.eq.s32.totalorder %s17, 0
      %p51 = por %p49, %p50
      %p52 = scmp.ne.s32.totalorder %s41, %s44
      %p53 = scmp.eq.s32.totalorder %s22, 1
      %p54 = por %p52, %p53
      %p55 = scmp.ne.s32.totalorder %s44, %s45
      %p56 = scmp.eq.s32.totalorder %s22, 0
      %p57 = por %p55, %p56
      %p58 = scmp.ne.s32.totalorder %s44, %s45
      %p59 = scmp.eq.s32.totalorder %s23, 1
      %p60 = por %p58, %p59
      %p62 = scmp.ne.s32.totalorder %s45, %s61
      %p63 = scmp.eq.s32.totalorder %s23, 0
      %p64 = por %p62, %p63
      %s65 = ssub.s32 %s24, %s36
      %s66 = ssub.s32 %s25, %s32
      %s67 = sor.u32 %s65, %s66
      %p68 = scmp.eq.s32.totalorder %s67, 0
      %s70 = sadd.s32 %s69, 1
      %s71 = scalar_select %p68, %s69, %s70
      %p74 = pneg %p68
      %p75 = scmp.eq.s32.totalorder %s17, 1
      %p76 = por %p74, %p75
      %p77 = scmp.ne.s32.totalorder %s69, %s72
      %p78 = scmp.eq.s32.totalorder %s17, 0
      %p79 = por %p77, %p78
      %p80 = scmp.ne.s32.totalorder %s69, %s72
      %p81 = scmp.eq.s32.totalorder %s22, 1
      %p82 = por %p80, %p81
      %p83 = scmp.ne.s32.totalorder %s72, %s73
      %p84 = scmp.eq.s32.totalorder %s22, 0
      %p85 = por %p83, %p84
      %p86 = scmp.ne.s32.totalorder %s72, %s73
      %p87 = scmp.eq.s32.totalorder %s23, 1
      %p88 = por %p86, %p87
      %p90 = scmp.ne.s32.totalorder %s73, %s89
      %p91 = scmp.eq.s32.totalorder %s23, 0
      %p92 = por %p90, %p91
      %s93 = ssub.s32 %s24, %s36
      %s94 = ssub.s32 %s25, %s32
      %s95 = sor.u32 %s93, %s94
      %p96 = scmp.eq.s32.totalorder %s95, 0
      %s98 = sadd.s32 %s97, 1
      %s99 = scalar_select %p96, %s97, %s98
      %p102 = pneg %p96
      %p103 = scmp.eq.s32.totalorder %s17, 1
      %p104 = por %p102, %p103
      %p105 = scmp.ne.s32.totalorder %s97, %s100
      %p106 = scmp.eq.s32.totalorder %s17, 0
      %p107 = por %p105, %p106
      %p108 = scmp.ne.s32.totalorder %s97, %s100
      %p109 = scmp.eq.s32.totalorder %s22, 1
      %p110 = por %p108, %p109
      %p111 = scmp.ne.s32.totalorder %s100, %s101
      %p112 = scmp.eq.s32.totalorder %s22, 0
      %p113 = por %p111, %p112
      %p114 = scmp.ne.s32.totalorder %s100, %s101
      %p115 = scmp.eq.s32.totalorder %s23, 1
      %p116 = por %p114, %p115
      %p118 = scmp.ne.s32.totalorder %s101, %s117
      %p119 = scmp.eq.s32.totalorder %s23, 0
      %p120 = por %p118, %p119
      %p121 = scmp.le.s32.totalorder 1, %s17
      %p122 = scmp.lt.s32.totalorder %s17, 3
      %p123 = pnand %p121, %p122
      %p124 = pneg %p123
      // Predicated region
      $region9: #{tpu_custom_call.1} parent=5 // pred_check
        _
      $region10: #{tpu_custom_call.1} parent=5 // pred_check_branch
        %126 = sbr.rel (%p123) target = $region12
      $region11: #{tpu_custom_call.1} parent=5 // pred_region
        %s127 = ssub.s32 %s17, 1
      $region12: #{tpu_custom_call.1} parent=5 // pred_fallthru
        _
      %p128 = scmp.lt.s32.totalorder %s17, 2
      // Predicated region
      $region13: #{tpu_custom_call.1} parent=5 // pred_check
        %p129 = pneg %p128
      $region14: #{tpu_custom_call.1} parent=5 // pred_check_branch
        %131 = sbr.rel (%p129) target = $region16
      $region15: #{tpu_custom_call.1} parent=5 // pred_region
        // Predicated region
        $region17: #{tpu_custom_call.1} parent=15 // pred_check
          %p132 = pneg %p51
        $region18: #{tpu_custom_call.1} parent=15 // pred_check_branch
          %134 = sbr.rel (%p132) target = $region20
        $region19: #{tpu_custom_call.1} parent=15 // pred_region
          %s135 = sand.u32 %s41, 1
          %s136 = scalar_lea.sflag [#allocation3], %s135
          %s137 = sand.u32 %s41, 1
          %s138 = smul.addr %s137, 8
          %s139 = scalar_lea.vmem [#allocation2], %s138
          %s141 = ssub.s32 128, 128
          %142 = vsyncadd %s136, %s141
          %s143 = smul.addr %s24, 4
          %s144 = sadd.s32 %s25, %s143
          %s145 = smul.addr %s144, 32
          %s146 = scalar_lea.hbm %s0, %s145
          %s147 = sshll.u32 %s139, 4
          %s148 = int_to_ptr.vmem [resolvable:$true] %s147
          %153 = dma.hbm_to_vmem [thread:$0]  %s146, 128, %s148, %s136, 32, 32, 2
        $region20: #{tpu_custom_call.1} parent=15 // pred_fallthru
          _
        // Predicated region
        $region21: #{tpu_custom_call.1} parent=15 // pred_check
          %p154 = pneg %p79
        $region22: #{tpu_custom_call.1} parent=15 // pred_check_branch
          %156 = sbr.rel (%p154) target = $region24
        $region23: #{tpu_custom_call.1} parent=15 // pred_region
          %s157 = sand.u32 %s69, 1
          %s158 = scalar_lea.sflag [#allocation6], %s157
          %s159 = sand.u32 %s69, 1
          %s160 = smul.addr %s159, 2
          %s161 = scalar_lea.vmem [#allocation5], %s160
          %s163 = ssub.s32 32, 32
          %164 = vsyncadd %s158, %s163
          %s165 = sadd.s32 %s25, %s24
          %s166 = smul.addr %s165, 32
          %s167 = scalar_lea.hbm %s1, %s166
          %s169 = sshll.u32 %s161, 4
          %s170 = int_to_ptr.vmem [resolvable:$true] %s169
          %172 = dma.hbm_to_vmem [thread:$0]  %s167, 32, %s170, %s158
        $region24: #{tpu_custom_call.1} parent=15 // pred_fallthru
          _
      $region16: #{tpu_custom_call.1} parent=5 // pred_fallthru
        _
      %p173 = scmp.le.s32.totalorder 1, %s17
      %p174 = scmp.lt.s32.totalorder %s17, 3
      %p175 = pnand %p173, %p174
      %p176 = pneg %p175
      // Predicated region
      $region25: #{tpu_custom_call.1} parent=5 // pred_check
        _
      $region26: #{tpu_custom_call.1} parent=5 // pred_check_branch
        %178 = sbr.rel (%p175) target = $region28
      $region27: #{tpu_custom_call.1} parent=5 // pred_region
        %s179 = ssub.s32 %s17, 1
        %s180 = sand.u32 %s44, 1
        %s181 = scalar_lea.sflag [#allocation3], %s180
        %s182 = sand.u32 %s44, 1
        %s183 = smul.addr %s182, 8
        %s184 = scalar_lea.vmem [#allocation2], %s183
        // Predicated region
        $region29: #{tpu_custom_call.1} parent=27 // pred_check
          %p185 = pneg %p57
        $region30: #{tpu_custom_call.1} parent=27 // pred_check_branch
          %187 = sbr.rel (%p185) target = $region32
        $region31: #{tpu_custom_call.1} parent=27 // pred_region
          %188 = dma.done %s181, 128
        $region32: #{tpu_custom_call.1} parent=27 // pred_fallthru
          _
        %s189 = sand.u32 %s72, 1
        %s190 = scalar_lea.sflag [#allocation6], %s189
        %s191 = sand.u32 %s72, 1
        %s192 = smul.addr %s191, 2
        %s193 = scalar_lea.vmem [#allocation5], %s192
        // Predicated region
        $region33: #{tpu_custom_call.1} parent=27 // pred_check
          %p194 = pneg %p85
        $region34: #{tpu_custom_call.1} parent=27 // pred_check_branch
          %196 = sbr.rel (%p194) target = $region36
        $region35: #{tpu_custom_call.1} parent=27 // pred_region
          %197 = dma.done %s190, 32
        $region36: #{tpu_custom_call.1} parent=27 // pred_fallthru
          _
        %s198 = sand.u32 %s44, 1
        %s199 = scalar_lea.sflag [#allocation3], %s198
        %s200 = sand.u32 %s44, 1
        %s201 = smul.addr %s200, 8
        %s202 = scalar_lea.vmem [#allocation2], %s201
        %p203 = pneg %p57
        %p204 = pneg %p54
        %s205 = sand.u32 %s72, 1
        %s206 = scalar_lea.sflag [#allocation6], %s205
        %s207 = sand.u32 %s72, 1
        %s208 = smul.addr %s207, 2
        %s209 = scalar_lea.vmem [#allocation5], %s208
        %p210 = pneg %p85
        %p211 = pneg %p82
        %p212 = pneg %p113
        %p213 = pneg %p110
        %s214 = sand.u32 %s100, 1
        %s215 = scalar_lea.sflag [#allocation4], %s214
        %s216 = sand.u32 %s100, 1
        %s217 = smul.addr %s216, 2
        %s218 = scalar_lea.vmem [#allocation7], %s217
        %v219 = vld [vmem:[%s184] sm:$0x3]
        %s220 = scalar_lea.vmem %s184, 2 [#allocation2]
        %v221 = vld [vmem:[%s220] sm:$0x3]
        %v222 = vmax.f32 %v219, %v221
        %s223 = scalar_lea.vmem %s184, 4 [#allocation2]
        %v224 = vld [vmem:[%s223] sm:$0x3]
        %v225 = vmax.f32 %v222, %v224
        %s226 = scalar_lea.vmem %s184, 6 [#allocation2]
        %v227 = vld [vmem:[%s226] sm:$0x3]
        %v228 = vmax.f32 %v225, %v227
        %v229 = vsub.f32 %v219, %v228
        %v230 = vmul.f32 %v229, 1.442695
        %v231 = vpow.pop %v230
        %v232 = vsub.f32 %v221, %v228
        %v233 = vmul.f32 %v232, 1.442695
        %v234 = vpow.pop %v233
        %v235 = vadd.f32 %v231, %v234
        %v236 = vsub.f32 %v224, %v228
        %v237 = vmul.f32 %v236, 1.442695
        %v238 = vpow.pop %v237
        %v239 = vadd.f32 %v235, %v238
        %v240 = vsub.f32 %v227, %v228
        %v241 = vmul.f32 %v240, 1.442695
        %v242 = vpow.pop %v241
        %v243 = vadd.f32 %v239, %v242
        %v244 = vrcp.pop %v243
        %v245 = vmul.f32 %v234, %v244
        %v246 = vld [vmem:[%s193] sm:$0x3]
        %v247 = vcvt.s32.f32 %v246
        %v248 = vmul.f32 %v245, %v247
        %vm249 = vcmask 1041408
        %v250 = vsel %vm249, %v248, 0.0
        %251 = vadd.xlane.f32.xlu0 %v250
        %v252 = vpop.xlane.xlu0 %251
        %v253 = vrot.slane %v252, 4
        %v254 = vadd.f32 %v252, %v253
        %v255 = vrot.slane %v254, 2
        %v256 = vadd.f32 %v254, %v255
        %v257 = vrot.slane %v256, 1
        %v258 = vadd.f32 %v256, %v257
        %s259 = vtos %v258
        %v260 = vadd.f32 %v245, %v247
        %v261 = vsel %vm249, %v260, 0.0
        %262 = vadd.xlane.f32.xlu0 %v261
        %v263 = vpop.xlane.xlu0 %262
        %v264 = vrot.slane %v263, 4
        %v265 = vadd.f32 %v263, %v264
        %v266 = vrot.slane %v265, 2
        %v267 = vadd.f32 %v265, %v266
        %v268 = vrot.slane %v267, 1
        %v269 = vadd.f32 %v267, %v268
        %s270 = vtos %v269
        %v271 = vlaneseq
        %v272 = vshrl.u32 %v271, 7
        %vm273 = vcmp.eq.s32.totalorder %v272, 0
        %v274 = vstv %s259
        %v275 = vstv %s270
        %v276 = vsel %vm273, %v274, %v275
        %277 = vst [vmem:[%s218] sm:$0x3] %v276
        %s278 = sand.u32 %s100, 1
        %s279 = scalar_lea.sflag [#allocation4], %s278
        %s280 = sand.u32 %s100, 1
        %s281 = smul.addr %s280, 2
        %s282 = scalar_lea.vmem [#allocation7], %s281
        // Predicated region
        $region37: #{tpu_custom_call.1} parent=27 // pred_check
          %p283 = pneg %p110
        $region38: #{tpu_custom_call.1} parent=27 // pred_check_branch
          %285 = sbr.rel (%p283) target = $region40
        $region39: #{tpu_custom_call.1} parent=27 // pred_region
          %s287 = ssub.s32 32, 32
          %288 = vsyncadd %s279, %s287
          %s289 = sadd.s32 %s27, %s26
          %s290 = smul.addr %s289, 32
          %s291 = scalar_lea.hbm %s2, %s290
          %s293 = sshll.u32 %s282, 4
          %s294 = int_to_ptr.vmem [resolvable:$true] %s293
          %296 = dma.vmem_to_hbm [thread:$0]  %s294, 32, %s291, %s279
        $region40: #{tpu_custom_call.1} parent=27 // pred_fallthru
          _
      $region28: #{tpu_custom_call.1} parent=5 // pred_fallthru
        _
      %p297 = scmp.le.s32.totalorder 2, %s17
      // Predicated region
      $region41: #{tpu_custom_call.1} parent=5 // pred_check
        %p298 = pneg %p297
      $region42: #{tpu_custom_call.1} parent=5 // pred_check_branch
        %300 = sbr.rel (%p298) target = $region44
      $region43: #{tpu_custom_call.1} parent=5 // pred_region
        %s301 = ssub.s32 %s17, 2
        // Predicated region
        $region45: #{tpu_custom_call.1} parent=43 // pred_check
          %p302 = pneg %p116
        $region46: #{tpu_custom_call.1} parent=43 // pred_check_branch
          %304 = sbr.rel (%p302) target = $region48
        $region47: #{tpu_custom_call.1} parent=43 // pred_region
          %s305 = sand.u32 %s101, 1
          %s306 = scalar_lea.sflag [#allocation4], %s305
          %s307 = sand.u32 %s101, 1
          %s308 = smul.addr %s307, 2
          %s309 = scalar_lea.vmem [#allocation7], %s308
          %310 = dma.done %s306, 32
        $region48: #{tpu_custom_call.1} parent=43 // pred_fallthru
          _
      $region44: #{tpu_custom_call.1} parent=5 // pred_fallthru
        _
    $region6: #{tpu_custom_call.1} parent=1 // loop_footer
      %s21 = sadd.s32 1, %s17
    $region7: #{tpu_custom_call.1} parent=1 // loop_footer_branch
      %16 = sbr.rel target = $region3
    $region8: #{tpu_custom_call.1} parent=1 // loop_exit
      _
    %311 = vsyncpa [#allocation3], 1
    %s312 = scalar_lea.sflag [#allocation3], 1
    %313 = vsyncpa %s312, 1
    %314 = vsyncpa [#allocation6], 1
    %s315 = scalar_lea.sflag [#allocation6], 1
    %316 = vsyncpa %s315, 1
    %317 = vsyncpa [#allocation4], 1
    %s318 = scalar_lea.sflag [#allocation4], 1
    %319 = vsyncpa %s318, 1

</llo_original>
